<compile_context>
chip_gen: v7x
topology: tpu7x:2x2x1
jax: 0.10.0
libtpu: 0.0.40
codegen_flags: <defaults>
</compile_context>

<pallas_src>
import jax
import jax.numpy as jnp
from jax import lax
from jax.experimental import pallas as pl
from jax.experimental.pallas import tpu as pltpu

N_HIDDEN = 100          # hidden width of the module
LEAKY_SLOPE = 0.01      # torch.nn.LeakyReLU default negative_slope

_LANE = 128
_SUBLANE = 8
_MIN_TILE = _SUBLANE * _LANE          # 1024: smallest dense (8,128) block
_MAX_TILE_ELEMS = 65536               # 256 KiB f32 per x tile (same for out)
_CHUNK_ELEMS = 8192                   # ~8 vregs of x live during the hidden loop
_UNROLL = 5                           # 100 hidden units -> 20 fori iterations


def _round_up(a, b):
    return ((a + b - 1) // b) * b


def _tile_geometry(n):
    """Pick (n_tiles, rows, cols) with rows % 8 == 0 and cols % 128 == 0."""
    n_ceil = _round_up(max(int(n), 1), _MIN_TILE)
    if n_ceil >= 2 * _MIN_TILE:
        # Emit >= 2 tiles whenever possible so the "parallel" grid axis can
        # feed both v7x TensorCores; cap the tile size for very large N.
        tile_e = min(_MAX_TILE_ELEMS, _round_up((n_ceil + 1) // 2, _MIN_TILE))
    else:
        tile_e = n_ceil
    cols = 4 * _LANE
    while cols > _LANE and tile_e % (_SUBLANE * cols) != 0:
        cols //= 2
    rows = tile_e // cols
    n_tiles = -(-n_ceil // tile_e)
    return n_tiles, rows, cols


def _compl_kernel(w1_sm, b1_sm, ch_sm, c01_sm, x_ref, o_ref):
    # w1_sm/b1_sm/ch_sm : (N_HIDDEN,) f32 scalars in SMEM
    # c01_sm            : (2,) f32 in SMEM -> [C0, C1]
    # x_ref/o_ref       : (ROWS, COLS) f32 in VMEM, sublane+lane dense
    rows, cols = x_ref.shape
    chunk_rows = max(_SUBLANE, min(rows, _CHUNK_ELEMS // cols))
    c0 = c01_sm[0]
    c1 = c01_sm[1]

    for r0 in range(0, rows, chunk_rows):        # static chunk loop
        cr = min(chunk_rows, rows - r0)          # multiple of 8
        x = x_ref[pl.ds(r0, cr), :]              # ~8 vregs, stays resident

        def body(i, acc, x=x):
            h0 = i * _UNROLL
            for u in range(_UNROLL):             # manual unroll (LLO visibility)
                h = h0 + u
                t = w1_sm[h] * x + b1_sm[h]      # fc1 for hidden unit h
                acc = acc + ch_sm[h] * jnp.abs(t)
            return acc

        acc = lax.fori_loop(0, N_HIDDEN // _UNROLL, body,
                            jnp.zeros((cr, cols), jnp.float32))
        # out = C0 + C1*x + sum_h ch[h]*|w1[h]*x + b1[h]|  (== fc2(leaky(fc1(x))))
        o_ref[pl.ds(r0, cr), :] = c0 + c1 * x + acc


def compl_forward(yy, w1, b1, w2, b2):
    """Forward pass of `Compl`.  Returns yy.shape + (1,) like the torch module.

    w1: (100, 1)  b1: (100,)  w2: (1, 100)  b2: (1,)
    """
    orig_shape = yy.shape
    x = yy.reshape(-1).astype(jnp.float32)
    n = x.shape[0]

    n_tiles, rows, cols = _tile_geometry(n)
    n_pad = n_tiles * rows * cols
    x2d = jnp.pad(x, (0, n_pad - n)).reshape(n_tiles * rows, cols)

    # Algebraic fold:  leaky(z) = a*z + c*|z|  (exact for 0 < slope < 1), so
    #   out(x) = C0 + C1*x + sum_h ch[h]*|w1[h]*x + b1[h]|
    a = 0.5 * (1.0 + LEAKY_SLOPE)
    c = 0.5 * (1.0 - LEAKY_SLOPE)
    w1v = w1.reshape(N_HIDDEN).astype(jnp.float32)
    b1v = b1.reshape(N_HIDDEN).astype(jnp.float32)
    w2v = w2.reshape(N_HIDDEN).astype(jnp.float32)
    chv = c * w2v
    c1 = a * jnp.sum(w2v * w1v)
    c0 = b2.reshape(()).astype(jnp.float32) + a * jnp.sum(w2v * b1v)
    c01 = jnp.stack([c0, c1])

    smem_spec = pl.BlockSpec(memory_space=pltpu.MemorySpace.SMEM)
    out = pl.pallas_call(
        _compl_kernel,
        out_shape=jax.ShapeDtypeStruct((n_tiles * rows, cols), jnp.float32),
        grid=(n_tiles,),
        in_specs=[
            smem_spec,                                     # w1 scalars (SMEM)
            smem_spec,                                     # b1 scalars (SMEM)
            smem_spec,                                     # ch = 0.495*w2 (SMEM)
            smem_spec,                                     # [C0, C1]     (SMEM)
            pl.BlockSpec((rows, cols), lambda i: (i, 0)),  # x tile (dense)
        ],
        out_specs=pl.BlockSpec((rows, cols), lambda i: (i, 0)),
        compiler_params=pltpu.CompilerParams(
            dimension_semantics=("parallel",),             # batch tiles independent
            vmem_limit_bytes=32 * 1024 * 1024),            # explicit cap (v7x-safe)
    )(w1v, b1v, chv, c01, x2d)

    return out.reshape(-1)[:n].reshape(orig_shape + (1,))


def init_params(key):
    """Deterministic init matching nn.Linear's U(-1/sqrt(fan_in), 1/sqrt(fan_in))."""
    k1, k2, k3, k4 = jax.random.split(key, 4)
    bound1 = 1.0                        # fan_in = 1
    w1 = jax.random.uniform(k1, (N_HIDDEN, 1), jnp.float32, -bound1, bound1)
    b1 = jax.random.uniform(k2, (N_HIDDEN,), jnp.float32, -bound1, bound1)
    bound2 = 1.0 / (N_HIDDEN ** 0.5)    # fan_in = 100
    w2 = jax.random.uniform(k3, (1, N_HIDDEN), jnp.float32, -bound2, bound2)
    b2 = jax.random.uniform(k4, (1,), jnp.float32, -bound2, bound2)
    return w1, b1, w2, b2


def _reference(yy, w1, b1, w2, b2):
    """Pure-JAX reference of the original (unfused) math."""
    x = yy.reshape(-1, 1).astype(jnp.float32)
    h = x * w1.reshape(1, -1) + b1.reshape(1, -1)          # fc1 (fan_in = 1)
    h = jnp.maximum(h, LEAKY_SLOPE * h)                    # LeakyReLU
    out = jnp.dot(h, w2.reshape(-1, 1),
                  precision=jax.lax.Precision.HIGHEST) + b2.reshape(1, 1)
    return out.reshape(yy.shape + (1,))


if __name__ == "__main__":
    key = jax.random.PRNGKey(0)
    kp, kx1, kx2 = jax.random.split(key, 3)
    w1, b1, w2, b2 = init_params(kp)

    fwd = jax.jit(compl_forward)

    # Case 1: small 2-D batch -> single (8, 128) tile.
    yy1 = jax.random.normal(kx1, (4, 16), jnp.float32)
    out1 = jax.block_until_ready(fwd(yy1, w1, b1, w2, b2))
    ref1 = _reference(yy1, w1, b1, w2, b2)
    assert out1.shape == (4, 16, 1)
    assert jnp.allclose(out1, ref1, atol=2e-5, rtol=1e-4), \
        float(jnp.max(jnp.abs(out1 - ref1)))

    # Case 2: ragged 1-D batch -> 2 tiles, exercises the multi-tile grid and
    # the in-kernel chunk loop.
    yy2 = jax.random.normal(kx2, (2500,), jnp.float32)
    out2 = jax.block_until_ready(fwd(yy2, w1, b1, w2, b2))
    ref2 = _reference(yy2, w1, b1, w2, b2)
    assert out2.shape == (2500, 1)
    assert jnp.allclose(out2, ref2, atol=2e-5, rtol=1e-4), \
        float(jnp.max(jnp.abs(out2 - ref2)))

    print("KERNEL_OK")
</pallas_src>

<mosaic_0001>
module attributes {stable_mosaic.version = 11 : i64} {
  func.func @_compl_kernel(%arg0: i32, %arg1: memref<100xf32, #tpu.memory_space<smem>>, %arg2: memref<100xf32, #tpu.memory_space<smem>>, %arg3: memref<100xf32, #tpu.memory_space<smem>>, %arg4: memref<2xf32, #tpu.memory_space<smem>>, %arg5: memref<8x128xf32, #tpu.memory_space<vmem>>, %arg6: memref<8x128xf32, #tpu.memory_space<vmem>>) attributes {dimension_semantics = [#tpu.dimension_semantics<parallel>], iteration_bounds = array<i64: 1>, scalar_prefetch = 0 : i64, scratch_operands = 0 : i64, tpu.core_type = #tpu.core_type<tc>, window_params = [{transform_indices = @transform_0, window_bounds = array<i64: 100>}, {transform_indices = @transform_1, window_bounds = array<i64: 100>}, {transform_indices = @transform_2, window_bounds = array<i64: 100>}, {transform_indices = @transform_3, window_bounds = array<i64: 2>}, {transform_indices = @transform_4, window_bounds = array<i64: 8, 128>}, {transform_indices = @transform_5, window_bounds = array<i64: 8, 128>}]} {
    %c0 = arith.constant 0 : index
    %0 = memref.load %arg4[%c0] : memref<2xf32, #tpu.memory_space<smem>>
    %c1 = arith.constant 1 : index
    %1 = memref.load %arg4[%c1] : memref<2xf32, #tpu.memory_space<smem>>
    %c0_0 = arith.constant 0 : index
    %c0_1 = arith.constant 0 : index
    %2 = vector.load %arg5[%c0_0, %c0_1] : memref<8x128xf32, #tpu.memory_space<vmem>>, vector<8x128xf32>
    %cst = arith.constant 0.000000e+00 : f32
    %3 = vector.broadcast %cst : f32 to vector<8x128xf32>
    %c0_i32 = arith.constant 0 : i32
    %c20_i32 = arith.constant 20 : i32
    %4 = arith.addi %c0_i32, %c20_i32 : i32
    %c1_i32 = arith.constant 1 : i32
    %5 = scf.for %arg7 = %c0_i32 to %4 step %c1_i32 iter_args(%arg8 = %3) -> (vector<8x128xf32>)  : i32 {
      %c5_i32 = arith.constant 5 : i32
      %12 = arith.muli %arg7, %c5_i32 : i32
      %c0_i32_5 = arith.constant 0 : i32
      %13 = arith.addi %12, %c0_i32_5 : i32
      %14 = arith.index_cast %13 : i32 to index
      %15 = memref.load %arg1[%14] : memref<100xf32, #tpu.memory_space<smem>>
      %16 = vector.broadcast %15 : f32 to vector<8x128xf32>
      %17 = arith.mulf %16, %2 : vector<8x128xf32>
      %18 = arith.index_cast %13 : i32 to index
      %19 = memref.load %arg2[%18] : memref<100xf32, #tpu.memory_space<smem>>
      %20 = vector.broadcast %19 : f32 to vector<8x128xf32>
      %21 = arith.addf %17, %20 : vector<8x128xf32>
      %22 = arith.index_cast %13 : i32 to index
      %23 = memref.load %arg3[%22] : memref<100xf32, #tpu.memory_space<smem>>
      %24 = math.absf %21 : vector<8x128xf32>
      %25 = vector.broadcast %23 : f32 to vector<8x128xf32>
      %26 = arith.mulf %25, %24 : vector<8x128xf32>
      %27 = arith.addf %arg8, %26 : vector<8x128xf32>
      %c1_i32_6 = arith.constant 1 : i32
      %28 = arith.addi %12, %c1_i32_6 : i32
      %29 = arith.index_cast %28 : i32 to index
      %30 = memref.load %arg1[%29] : memref<100xf32, #tpu.memory_space<smem>>
      %31 = vector.broadcast %30 : f32 to vector<8x128xf32>
      %32 = arith.mulf %31, %2 : vector<8x128xf32>
      %33 = arith.index_cast %28 : i32 to index
      %34 = memref.load %arg2[%33] : memref<100xf32, #tpu.memory_space<smem>>
      %35 = vector.broadcast %34 : f32 to vector<8x128xf32>
      %36 = arith.addf %32, %35 : vector<8x128xf32>
      %37 = arith.index_cast %28 : i32 to index
      %38 = memref.load %arg3[%37] : memref<100xf32, #tpu.memory_space<smem>>
      %39 = math.absf %36 : vector<8x128xf32>
      %40 = vector.broadcast %38 : f32 to vector<8x128xf32>
      %41 = arith.mulf %40, %39 : vector<8x128xf32>
      %42 = arith.addf %27, %41 : vector<8x128xf32>
      %c2_i32 = arith.constant 2 : i32
      %43 = arith.addi %12, %c2_i32 : i32
      %44 = arith.index_cast %43 : i32 to index
      %45 = memref.load %arg1[%44] : memref<100xf32, #tpu.memory_space<smem>>
      %46 = vector.broadcast %45 : f32 to vector<8x128xf32>
      %47 = arith.mulf %46, %2 : vector<8x128xf32>
      %48 = arith.index_cast %43 : i32 to index
      %49 = memref.load %arg2[%48] : memref<100xf32, #tpu.memory_space<smem>>
      %50 = vector.broadcast %49 : f32 to vector<8x128xf32>
      %51 = arith.addf %47, %50 : vector<8x128xf32>
      %52 = arith.index_cast %43 : i32 to index
      %53 = memref.load %arg3[%52] : memref<100xf32, #tpu.memory_space<smem>>
      %54 = math.absf %51 : vector<8x128xf32>
      %55 = vector.broadcast %53 : f32 to vector<8x128xf32>
      %56 = arith.mulf %55, %54 : vector<8x128xf32>
      %57 = arith.addf %42, %56 : vector<8x128xf32>
      %c3_i32 = arith.constant 3 : i32
      %58 = arith.addi %12, %c3_i32 : i32
      %59 = arith.index_cast %58 : i32 to index
      %60 = memref.load %arg1[%59] : memref<100xf32, #tpu.memory_space<smem>>
      %61 = vector.broadcast %60 : f32 to vector<8x128xf32>
      %62 = arith.mulf %61, %2 : vector<8x128xf32>
      %63 = arith.index_cast %58 : i32 to index
      %64 = memref.load %arg2[%63] : memref<100xf32, #tpu.memory_space<smem>>
      %65 = vector.broadcast %64 : f32 to vector<8x128xf32>
      %66 = arith.addf %62, %65 : vector<8x128xf32>
      %67 = arith.index_cast %58 : i32 to index
      %68 = memref.load %arg3[%67] : memref<100xf32, #tpu.memory_space<smem>>
      %69 = math.absf %66 : vector<8x128xf32>
      %70 = vector.broadcast %68 : f32 to vector<8x128xf32>
      %71 = arith.mulf %70, %69 : vector<8x128xf32>
      %72 = arith.addf %57, %71 : vector<8x128xf32>
      %c4_i32 = arith.constant 4 : i32
      %73 = arith.addi %12, %c4_i32 : i32
      %74 = arith.index_cast %73 : i32 to index
      %75 = memref.load %arg1[%74] : memref<100xf32, #tpu.memory_space<smem>>
      %76 = vector.broadcast %75 : f32 to vector<8x128xf32>
      %77 = arith.mulf %76, %2 : vector<8x128xf32>
      %78 = arith.index_cast %73 : i32 to index
      %79 = memref.load %arg2[%78] : memref<100xf32, #tpu.memory_space<smem>>
      %80 = vector.broadcast %79 : f32 to vector<8x128xf32>
      %81 = arith.addf %77, %80 : vector<8x128xf32>
      %82 = arith.index_cast %73 : i32 to index
      %83 = memref.load %arg3[%82] : memref<100xf32, #tpu.memory_space<smem>>
      %84 = math.absf %81 : vector<8x128xf32>
      %85 = vector.broadcast %83 : f32 to vector<8x128xf32>
      %86 = arith.mulf %85, %84 : vector<8x128xf32>
      %87 = arith.addf %72, %86 : vector<8x128xf32>
      scf.yield %87 : vector<8x128xf32>
    }
    %c20_i32_2 = arith.constant 20 : i32
    %6 = vector.broadcast %1 : f32 to vector<8x128xf32>
    %7 = arith.mulf %6, %2 : vector<8x128xf32>
    %8 = vector.broadcast %0 : f32 to vector<8x128xf32>
    %9 = arith.addf %8, %7 : vector<8x128xf32>
    %10 = arith.addf %9, %5 : vector<8x128xf32>
    %c0_3 = arith.constant 0 : index
    %c0_4 = arith.constant 0 : index
    %11 = vector.load %arg6[%c0_3, %c0_4] : memref<8x128xf32, #tpu.memory_space<vmem>>, vector<8x128xf32>
    tpu.vector_store %arg6[%c0_3, %c0_4], %10 {strides = array<i32>} : memref<8x128xf32, #tpu.memory_space<vmem>>, vector<8x128xf32>,
    return
  }
  func.func @transform_0(%arg0: i32) -> i32 {
    %c0_i32 = arith.constant 0 : i32
    %c0_i32_0 = arith.constant 0 : i32
    return %c0_i32 : i32
  }
  func.func @transform_1(%arg0: i32) -> i32 {
    %c0_i32 = arith.constant 0 : i32
    %c0_i32_0 = arith.constant 0 : i32
    return %c0_i32 : i32
  }
  func.func @transform_2(%arg0: i32) -> i32 {
    %c0_i32 = arith.constant 0 : i32
    %c0_i32_0 = arith.constant 0 : i32
    return %c0_i32 : i32
  }
  func.func @transform_3(%arg0: i32) -> i32 {
    %c0_i32 = arith.constant 0 : i32
    %c0_i32_0 = arith.constant 0 : i32
    return %c0_i32 : i32
  }
  func.func @transform_4(%arg0: i32) -> (i32, i32) {
    %c0_i32 = arith.constant 0 : i32
    %c0_i32_0 = arith.constant 0 : i32
    return %arg0, %c0_i32 : i32, i32
  }
  func.func @transform_5(%arg0: i32) -> (i32, i32) {
    %c0_i32 = arith.constant 0 : i32
    %c0_i32_0 = arith.constant 0 : i32
    return %arg0, %c0_i32 : i32, i32
  }
}

</mosaic_0001>

<llo_original>
// kernel: compl_forward.1
$region0: #{compl_forward.1}
  #allocation0 [shape = 'u32[]', space=smem, size = 0x4, offset = 0x4, fixed_abs, tag = 'smem constant byte address 0x4 - core index']
  #allocation1 [shape = 'u32[144,128]{1,0:T(1,128)}', space=vmem, size = 0x12000, scoped, tag = 'internal scratch']
  %s0 = inlined_call_operand.vmem [shape: f32[100], index: 0, kind: input, shape index: {}]
  %s1 = inlined_call_operand.vmem [shape: f32[100], index: 1, kind: input, shape index: {}]
  %s2 = inlined_call_operand.vmem [shape: f32[100], index: 2, kind: input, shape index: {}]
  %s3 = inlined_call_operand.vmem [shape: f32[2], index: 3, kind: input, shape index: {}]
  %s4 = inlined_call_operand.vmem [shape: f32[8,128], index: 4, kind: input, shape index: {}]
  %s5 = inlined_call_operand.vmem [shape: f32[8,128], index: 5, kind: output, shape index: {}]
  %s6 = sld [smem:[#allocation0]]
  $region53: #{compl_forward.1} parent=0
    _
  %s8 = ssub.s32 1, %s6
  %s9 = scalar_select 0, %s8, %s6
  $region1: #{compl_forward.1} parent=0
    #allocation2 [shape = 'u8[512]{0}', space=smem, size = 0x200, scoped, tag = 'input window, operand 0, single buffered']
    #allocation3 [shape = 's32[1]{0}', space=sflag, size = 0x4, scoped, tag = 'scoped memory for compl_forward.1']
    #allocation4 [shape = 'u8[512]{0}', space=smem, size = 0x200, scoped, tag = 'input window, operand 1, single buffered']
    #allocation5 [shape = 's32[1]{0}', space=sflag, size = 0x4, scoped, tag = 'scoped memory for compl_forward.1']
    #allocation6 [shape = 'u8[512]{0}', space=smem, size = 0x200, scoped, tag = 'input window, operand 2, single buffered']
    #allocation7 [shape = 'u8[512]{0}', space=smem, size = 0x200, scoped, tag = 'input window, operand 3, single buffered']
    #allocation8 [shape = 's32[1]{0}', space=sflag, size = 0x4, scoped, tag = 'scoped memory for compl_forward.1']
    %10 = vsyncpa [#allocation3], 0
    %11 = vsyncpa [#allocation5], 0
    %12 = vsyncpa [#allocation8], 0
    // Predicated region
    $region2: #{compl_forward.1} parent=1 // pred_check
      _
    $region3: #{compl_forward.1} parent=1 // pred_check_branch
      %14 = sbr.rel (0) target = $region5
    $region4: #{compl_forward.1} parent=1 // pred_region
      %s16 = ssub.s32 16, 16
      %17 = vsyncadd [#allocation3], %s16
      %s19 = sshll.u32 %s0, 4
      %s20 = int_to_ptr.vmem [resolvable:$true] %s19
      %22 = dma.vmem_to_smem %s20, 16, [#allocation2], [#allocation3]
    $region5: #{compl_forward.1} parent=1 // pred_fallthru
      _
    // Predicated region
    $region6: #{compl_forward.1} parent=1 // pred_check
      _
    $region7: #{compl_forward.1} parent=1 // pred_check_branch
      %24 = sbr.rel (0) target = $region9
    $region8: #{compl_forward.1} parent=1 // pred_region
      %s26 = ssub.s32 16, 16
      %27 = vsyncadd [#allocation5], %s26
      %s29 = sshll.u32 %s1, 4
      %s30 = int_to_ptr.vmem [resolvable:$true] %s29
      %32 = dma.vmem_to_smem %s30, 16, [#allocation4], [#allocation5]
    $region9: #{compl_forward.1} parent=1 // pred_fallthru
      _
    // Predicated region
    $region10: #{compl_forward.1} parent=1 // pred_check
      _
    $region11: #{compl_forward.1} parent=1 // pred_check_branch
      %34 = sbr.rel (0) target = $region13
    $region12: #{compl_forward.1} parent=1 // pred_region
      %s36 = ssub.s32 16, 16
      %37 = vsyncadd [#allocation5], %s36
      %s39 = sshll.u32 %s2, 4
      %s40 = int_to_ptr.vmem [resolvable:$true] %s39
      %42 = dma.vmem_to_smem %s40, 16, [#allocation6], [#allocation5]
    $region13: #{compl_forward.1} parent=1 // pred_fallthru
      _
    // Predicated region
    $region14: #{compl_forward.1} parent=1 // pred_check
      _
    $region15: #{compl_forward.1} parent=1 // pred_check_branch
      %44 = sbr.rel (0) target = $region17
    $region16: #{compl_forward.1} parent=1 // pred_region
      %s46 = ssub.s32 16, 16
      %47 = vsyncadd [#allocation8], %s46
      %s49 = sshll.u32 %s3, 4
      %s50 = int_to_ptr.vmem [resolvable:$true] %s49
      %52 = dma.vmem_to_smem %s50, 16, [#allocation7], [#allocation8]
    $region17: #{compl_forward.1} parent=1 // pred_fallthru
      _
    // Predicated region
    $region18: #{compl_forward.1} parent=1 // pred_check
      _
    $region19: #{compl_forward.1} parent=1 // pred_check_branch
      %54 = sbr.rel (0) target = $region21
    $region20: #{compl_forward.1} parent=1 // pred_region
      _
    $region21: #{compl_forward.1} parent=1 // pred_fallthru
      _
    // Predicated region
    $region22: #{compl_forward.1} parent=1 // pred_check
      _
    $region23: #{compl_forward.1} parent=1 // pred_check_branch
      %56 = sbr.rel (0) target = $region25
    $region24: #{compl_forward.1} parent=1 // pred_region
      %57 = dma.done [#allocation3], 16
    $region25: #{compl_forward.1} parent=1 // pred_fallthru
      _
    // Predicated region
    $region26: #{compl_forward.1} parent=1 // pred_check
      _
    $region27: #{compl_forward.1} parent=1 // pred_check_branch
      %59 = sbr.rel (0) target = $region29
    $region28: #{compl_forward.1} parent=1 // pred_region
      %60 = dma.done [#allocation5], 16
    $region29: #{compl_forward.1} parent=1 // pred_fallthru
      _
    // Predicated region
    $region30: #{compl_forward.1} parent=1 // pred_check
      _
    $region31: #{compl_forward.1} parent=1 // pred_check_branch
      %62 = sbr.rel (0) target = $region33
    $region32: #{compl_forward.1} parent=1 // pred_region
      %63 = dma.done [#allocation5], 16
    $region33: #{compl_forward.1} parent=1 // pred_fallthru
      _
    // Predicated region
    $region34: #{compl_forward.1} parent=1 // pred_check
      _
    $region35: #{compl_forward.1} parent=1 // pred_check_branch
      %65 = sbr.rel (0) target = $region37
    $region36: #{compl_forward.1} parent=1 // pred_region
      %66 = dma.done [#allocation8], 16
    $region37: #{compl_forward.1} parent=1 // pred_fallthru
      _
    %67 = sfence
    %s68 = sld [smem:[#allocation7]]
    %s69 = sld [smem:[#allocation7 + $0x1]]
    %v70 = vld [vmem:[%s4] sm:$0xff]
    loop: start=0, step=1, limit=20
    $region38: #{compl_forward.1} parent=1 // loop_pre_header
      _
    $region39: #{compl_forward.1} parent=1 // loop_header
      %s72 = sphi 0, %s76
      %p73 = scmp.ge.s32.totalorder %s72, 20
      %v77 = vphi 0.0, %v137
    $region40: #{compl_forward.1} parent=1 // loop_header_branch
      %75 = sbr.rel (%p73) target = $region44
    $region41: #{compl_forward.1} parent=1 // loop_body
      %s78 = smul.u32 %s72, 5
      %s79 = sld [smem:[#allocation2 + %s78]]
      %v80 = vstv %s79
      %v81 = vmul.f32 %v80, %v70
      %s82 = sld [smem:[#allocation4 + %s78]]
      %v83 = vstv %s82
      %v84 = vadd.f32 %v81, %v83
      %s85 = sld [smem:[#allocation6 + %s78]]
      %v86 = vand.u32 2147483647, %v84
      %v87 = vstv %s85
      %v88 = vmul.f32 %v87, %v86
      %v89 = vadd.f32 %v77, %v88
      %s90 = sadd.s32 %s78, 1
      %s91 = sld [smem:[#allocation2 + %s90]]
      %v92 = vstv %s91
      %v93 = vmul.f32 %v92, %v70
      %s94 = sld [smem:[#allocation4 + %s90]]
      %v95 = vstv %s94
      %v96 = vadd.f32 %v93, %v95
      %s97 = sld [smem:[#allocation6 + %s90]]
      %v98 = vand.u32 2147483647, %v96
      %v99 = vstv %s97
      %v100 = vmul.f32 %v99, %v98
      %v101 = vadd.f32 %v89, %v100
      %s102 = sadd.s32 %s78, 2
      %s103 = sld [smem:[#allocation2 + %s102]]
      %v104 = vstv %s103
      %v105 = vmul.f32 %v104, %v70
      %s106 = sld [smem:[#allocation4 + %s102]]
      %v107 = vstv %s106
      %v108 = vadd.f32 %v105, %v107
      %s109 = sld [smem:[#allocation6 + %s102]]
      %v110 = vand.u32 2147483647, %v108
      %v111 = vstv %s109
      %v112 = vmul.f32 %v111, %v110
      %v113 = vadd.f32 %v101, %v112
      %s114 = sadd.s32 %s78, 3
      %s115 = sld [smem:[#allocation2 + %s114]]
      %v116 = vstv %s115
      %v117 = vmul.f32 %v116, %v70
      %s118 = sld [smem:[#allocation4 + %s114]]
      %v119 = vstv %s118
      %v120 = vadd.f32 %v117, %v119
      %s121 = sld [smem:[#allocation6 + %s114]]
      %v122 = vand.u32 2147483647, %v120
      %v123 = vstv %s121
      %v124 = vmul.f32 %v123, %v122
      %v125 = vadd.f32 %v113, %v124
      %s126 = sadd.s32 %s78, 4
      %s127 = sld [smem:[#allocation2 + %s126]]
      %v128 = vstv %s127
      %v129 = vmul.f32 %v128, %v70
      %s130 = sld [smem:[#allocation4 + %s126]]
      %v131 = vstv %s130
      %v132 = vadd.f32 %v129, %v131
      %s133 = sld [smem:[#allocation6 + %s126]]
      %v134 = vand.u32 2147483647, %v132
      %v135 = vstv %s133
      %v136 = vmul.f32 %v135, %v134
      %v137 = vadd.f32 %v125, %v136
    $region42: #{compl_forward.1} parent=1 // loop_footer
      %s76 = sadd.s32 1, %s72
    $region43: #{compl_forward.1} parent=1 // loop_footer_branch
      %71 = sbr.rel target = $region39
    $region44: #{compl_forward.1} parent=1 // loop_exit
      _
    %v138 = vstv %s69
    %v139 = vmul.f32 %v138, %v70
    %v140 = vstv %s68
    %v141 = vadd.f32 %v140, %v139
    %v142 = vadd.f32 %v141, %v77
    %143 = vst [vmem:[%s5] sm:$0xff] %v142
    // Predicated region
    $region45: #{compl_forward.1} parent=1 // pred_check
      _
    $region46: #{compl_forward.1} parent=1 // pred_check_branch
      %145 = sbr.rel (0) target = $region48
    $region47: #{compl_forward.1} parent=1 // pred_region
      _
    $region48: #{compl_forward.1} parent=1 // pred_fallthru
      _
    // Predicated region
    $region49: #{compl_forward.1} parent=1 // pred_check
      _
    $region50: #{compl_forward.1} parent=1 // pred_check_branch
      %147 = sbr.rel (0) target = $region52
    $region51: #{compl_forward.1} parent=1 // pred_region
      _
    $region52: #{compl_forward.1} parent=1 // pred_fallthru
      _
    %148 = vsyncpa [#allocation3], 1
    %149 = vsyncpa [#allocation5], 1
    %150 = vsyncpa [#allocation8], 1

</llo_original>
